<compile_context>
chip_gen: v5e
topology: v5e:2x2
jax: 0.10.0
libtpu: 0.0.40
codegen_flags: <defaults>
</compile_context>

<pallas_src>
import functools

import jax
import jax.numpy as jnp
from jax.experimental import pallas as pl
from jax.experimental.pallas import tpu as pltpu


def _round_up(x, m):
    return ((x + m - 1) // m) * m


def _decoder_kernel(z_ref, w1_ref, b1_ref, w2_ref, b2_ref, o_ref):
    # z_ref : [E, TM]  compute dtype (rows on the lane axis -> fully lane-dense)
    # w1_ref: [H, E]   w2_ref: [F, H]   torch [out, in] layout, compute dtype, VMEM-resident
    # b1_ref: [H, 1]   b2_ref: [F, 1]   f32 columns -> broadcast along the lane axis
    # o_ref : [F, TM]  f32, lane-dense stores
    h = jnp.dot(w1_ref[...], z_ref[...], preferred_element_type=jnp.float32)
    h = h + b1_ref[...]                       # [H, TM] f32, all 128 lanes live
    h = jnp.where(h >= 0, h, 0.1 * h)         # LeakyReLU(0.1) in f32 on the VPU
    # dropout -> identity (eval mode)         # TODO(synk): training-mode dropout mask
    out = jnp.dot(w2_ref[...], h.astype(w2_ref.dtype),
                  preferred_element_type=jnp.float32)
    out = out + b2_ref[...]                   # [F, TM]
    o_ref[...] = out.astype(o_ref.dtype)


def feature_decoder_forward(z, w1, b1, w2, b2, *, tm=2048,
                            compute_dtype=jnp.bfloat16):
    """FeatureDecoder forward.

    z : [..., E] float32
    w1: [H, E], b1: [H]   (fc1, torch [out, in] layout)
    w2: [F, H], b2: [F]   (fc2, torch [out, in] layout)
    returns [..., F] float32
    """
    lead = z.shape[:-1]
    E = z.shape[-1]
    H, F = w1.shape[0], w2.shape[0]

    z2d = z.reshape(-1, E)
    M = z2d.shape[0]

    # Row-tile: multiple of 128 (lane width / v5e MXU; also divides v6e/v7x 256x256 MXU).
    TM = min(tm, _round_up(M, 128))
    Mp = _round_up(M, TM)                     # pad rows so the grid divides evenly

    # Lane-dense presentation: z as [E, Mp] in the compute dtype
    # (transpose + cast + pad fuse into one XLA pass over z).
    zt = z2d.T.astype(compute_dtype)
    if Mp != M:
        zt = jnp.pad(zt, ((0, 0), (0, Mp - M)))

    w1c = w1.astype(compute_dtype)
    w2c = w2.astype(compute_dtype)
    b1c = b1.reshape(H, 1).astype(jnp.float32)
    b2c = b2.reshape(F, 1).astype(jnp.float32)

    out_fm = pl.pallas_call(
        _decoder_kernel,
        out_shape=jax.ShapeDtypeStruct((F, Mp), jnp.float32),
        grid_spec=pltpu.PrefetchScalarGridSpec(
            num_scalar_prefetch=0,
            grid=(Mp // TM,),
            in_specs=[
                pl.BlockSpec((E, TM), lambda i: (0, i)),   # z: new tile each grid step
                pl.BlockSpec((H, E), lambda i: (0, 0)),    # weights/biases: fetched once,
                pl.BlockSpec((H, 1), lambda i: (0, 0)),    # held resident in VMEM
                pl.BlockSpec((F, H), lambda i: (0, 0)),
                pl.BlockSpec((F, 1), lambda i: (0, 0)),
            ],
            out_specs=pl.BlockSpec((F, TM), lambda i: (0, i)),
        ),
        compiler_params=pltpu.CompilerParams(
            dimension_semantics=("parallel",)),   # shard row tiles across v7x's 2 TCs
    )(zt, w1c, b1c, w2c, b2c)

    out2d = out_fm[:, :M].T                   # [M, F]; F is tiny so this transpose is cheap
    return out2d.reshape(*lead, F)


def xavier_uniform(key, out_features, in_features, dtype=jnp.float32):
    # matches torch.nn.init.xavier_uniform_ (gain=1) on a [out, in] nn.Linear weight
    limit = (6.0 / (in_features + out_features)) ** 0.5
    return jax.random.uniform(key, (out_features, in_features), dtype,
                              minval=-limit, maxval=limit)


if __name__ == "__main__":
    # small shapes consistent with the module
    batch, seq = 2, 8
    embed_dim = 32
    hidden = embed_dim // 2      # 16
    num_features = 6             # meta['num_feat'] stand-in

    key = jax.random.PRNGKey(0)
    kz, k1, k2 = jax.random.split(key, 3)

    # input z: [batch, seq, embed_dim]
    z = jax.random.normal(kz, (batch, seq, embed_dim), jnp.float32)

    # parameters in torch layout (xavier_uniform weights, zero biases)
    w1 = xavier_uniform(k1, hidden, embed_dim)       # [H, E]
    b1 = jnp.zeros((hidden,), jnp.float32)
    w2 = xavier_uniform(k2, num_features, hidden)    # [F, H]
    b2 = jnp.zeros((num_features,), jnp.float32)

    fwd = jax.jit(functools.partial(feature_decoder_forward, tm=2048))
    out = fwd(z, w1, b1, w2, b2)
    jax.block_until_ready(out)

    # pure-JAX reference with matching bf16-input / f32-accumulate numerics
    z2d = z.reshape(-1, embed_dim)
    zc = z2d.astype(jnp.bfloat16).astype(jnp.float32)
    w1c = w1.astype(jnp.bfloat16).astype(jnp.float32)
    w2c = w2.astype(jnp.bfloat16).astype(jnp.float32)
    h_ref = zc @ w1c.T + b1
    h_ref = jnp.where(h_ref >= 0, h_ref, 0.1 * h_ref)
    h_ref = h_ref.astype(jnp.bfloat16).astype(jnp.float32)
    ref = (h_ref @ w2c.T + b2).reshape(batch, seq, num_features)

    assert out.shape == (batch, seq, num_features)
    assert jnp.allclose(out, ref, atol=1e-2, rtol=1e-2), "mismatch vs reference"

    print("KERNEL_OK")
</pallas_src>

<mosaic_0001>
module attributes {stable_mosaic.version = 11 : i64} {
  func.func @_decoder_kernel(%arg0: i32, %arg1: memref<32x128xbf16, #tpu.memory_space<vmem>>, %arg2: memref<16x32xbf16, #tpu.memory_space<vmem>>, %arg3: memref<16x1xf32, #tpu.memory_space<vmem>>, %arg4: memref<6x16xbf16, #tpu.memory_space<vmem>>, %arg5: memref<6x1xf32, #tpu.memory_space<vmem>>, %arg6: memref<6x128xf32, #tpu.memory_space<vmem>>) attributes {dimension_semantics = [#tpu.dimension_semantics<parallel>], iteration_bounds = array<i64: 1>, scalar_prefetch = 0 : i64, scratch_operands = 0 : i64, tpu.core_type = #tpu.core_type<tc>, window_params = [{transform_indices = @transform_0, window_bounds = array<i64: 32, 128>}, {pipeline_mode = #tpu.pipeline_mode<synchronous>, transform_indices = @transform_1, window_bounds = array<i64: 16, 32>}, {pipeline_mode = #tpu.pipeline_mode<synchronous>, transform_indices = @transform_2, window_bounds = array<i64: 16, 1>}, {pipeline_mode = #tpu.pipeline_mode<synchronous>, transform_indices = @transform_3, window_bounds = array<i64: 6, 16>}, {pipeline_mode = #tpu.pipeline_mode<synchronous>, transform_indices = @transform_4, window_bounds = array<i64: 6, 1>}, {transform_indices = @transform_5, window_bounds = array<i64: 6, 128>}]} {
    %c0 = arith.constant 0 : index
    %c0_0 = arith.constant 0 : index
    %0 = vector.load %arg2[%c0, %c0_0] : memref<16x32xbf16, #tpu.memory_space<vmem>>, vector<16x32xbf16>
    %c0_1 = arith.constant 0 : index
    %c0_2 = arith.constant 0 : index
    %1 = vector.load %arg1[%c0_1, %c0_2] : memref<32x128xbf16, #tpu.memory_space<vmem>>, vector<32x128xbf16>
    %cst = arith.constant dense<0.000000e+00> : vector<16x128xf32>
    %2 = tpu.matmul %0, %1, %cst {dimension_numbers = #tpu.dot_dimension_numbers<[1], [0], [0], [1], [0, 0, 1, 1], [], []>} : vector<16x32xbf16>, vector<32x128xbf16>, vector<16x128xf32> -> vector<16x128xf32>
    %c0_3 = arith.constant 0 : index
    %c0_4 = arith.constant 0 : index
    %3 = vector.load %arg3[%c0_3, %c0_4] : memref<16x1xf32, #tpu.memory_space<vmem>>, vector<16x1xf32>
    %4 = vector.broadcast %3 : vector<16x1xf32> to vector<16x128xf32>
    %5 = arith.addf %2, %4 : vector<16x128xf32>
    %cst_5 = arith.constant 0.000000e+00 : f32
    %6 = vector.broadcast %cst_5 : f32 to vector<16x128xf32>
    %7 = arith.cmpf oge, %5, %6 : vector<16x128xf32>
    %cst_6 = arith.constant 1.000000e-01 : f32
    %8 = vector.broadcast %cst_6 : f32 to vector<16x128xf32>
    %9 = arith.mulf %8, %5 : vector<16x128xf32>
    %10 = arith.select %7, %5, %9 : vector<16x128xi1>, vector<16x128xf32>
    %c0_7 = arith.constant 0 : index
    %c0_8 = arith.constant 0 : index
    %11 = vector.load %arg4[%c0_7, %c0_8] : memref<6x16xbf16, #tpu.memory_space<vmem>>, vector<6x16xbf16>
    %12 = arith.truncf %10 : vector<16x128xf32> to vector<16x128xbf16>
    %cst_9 = arith.constant dense<0.000000e+00> : vector<6x128xf32>
    %13 = tpu.matmul %11, %12, %cst_9 {dimension_numbers = #tpu.dot_dimension_numbers<[1], [0], [0], [1], [0, 0, 1, 1], [], []>} : vector<6x16xbf16>, vector<16x128xbf16>, vector<6x128xf32> -> vector<6x128xf32>
    %c0_10 = arith.constant 0 : index
    %c0_11 = arith.constant 0 : index
    %14 = vector.load %arg5[%c0_10, %c0_11] : memref<6x1xf32, #tpu.memory_space<vmem>>, vector<6x1xf32>
    %15 = vector.broadcast %14 : vector<6x1xf32> to vector<6x128xf32>
    %16 = arith.addf %13, %15 : vector<6x128xf32>
    %c0_12 = arith.constant 0 : index
    %c0_13 = arith.constant 0 : index
    %17 = vector.load %arg6[%c0_12, %c0_13] : memref<6x128xf32, #tpu.memory_space<vmem>>, vector<6x128xf32>
    tpu.vector_store %arg6[%c0_12, %c0_13], %16 {strides = array<i32>} : memref<6x128xf32, #tpu.memory_space<vmem>>, vector<6x128xf32>,
    return
  }
  func.func @transform_0(%arg0: i32) -> (i32, i32) {
    %c0_i32 = arith.constant 0 : i32
    %c0_i32_0 = arith.constant 0 : i32
    return %c0_i32, %arg0 : i32, i32
  }
  func.func @transform_1(%arg0: i32) -> (i32, i32) {
    %c0_i32 = arith.constant 0 : i32
    %c0_i32_0 = arith.constant 0 : i32
    %c0_i32_1 = arith.constant 0 : i32
    return %c0_i32, %c0_i32_0 : i32, i32
  }
  func.func @transform_2(%arg0: i32) -> (i32, i32) {
    %c0_i32 = arith.constant 0 : i32
    %c0_i32_0 = arith.constant 0 : i32
    %c0_i32_1 = arith.constant 0 : i32
    return %c0_i32, %c0_i32_0 : i32, i32
  }
  func.func @transform_3(%arg0: i32) -> (i32, i32) {
    %c0_i32 = arith.constant 0 : i32
    %c0_i32_0 = arith.constant 0 : i32
    %c0_i32_1 = arith.constant 0 : i32
    return %c0_i32, %c0_i32_0 : i32, i32
  }
  func.func @transform_4(%arg0: i32) -> (i32, i32) {
    %c0_i32 = arith.constant 0 : i32
    %c0_i32_0 = arith.constant 0 : i32
    %c0_i32_1 = arith.constant 0 : i32
    return %c0_i32, %c0_i32_0 : i32, i32
  }
  func.func @transform_5(%arg0: i32) -> (i32, i32) {
    %c0_i32 = arith.constant 0 : i32
    %c0_i32_0 = arith.constant 0 : i32
    return %c0_i32, %arg0 : i32, i32
  }
}

</mosaic_0001>

<llo_original>
// kernel: feature_decoder_forward.1
$region0: #{feature_decoder_forward.1}
  #allocation0 [shape = 'u32[]', space=smem, size = 0x4, offset = 0x4, fixed_abs, tag = 'smem constant byte address 0x4 - core index']
  #allocation1 [shape = 'u32[72,128]{1,0:T(1,128)}', space=vmem, size = 0x9000, scoped, tag = 'internal scratch']
  %s0 = inlined_call_operand.vmem [shape: bf16[32,128], index: 0, kind: input, shape index: {}]
  %s1 = inlined_call_operand.vmem [shape: bf16[16,32], index: 1, kind: input, shape index: {}]
  %s2 = inlined_call_operand.vmem [shape: f32[16,1], index: 2, kind: input, shape index: {}]
  %s3 = inlined_call_operand.vmem [shape: bf16[6,16], index: 3, kind: input, shape index: {}]
  %s4 = inlined_call_operand.vmem [shape: f32[6,1], index: 4, kind: input, shape index: {}]
  %s5 = inlined_call_operand.vmem [shape: f32[6,128], index: 5, kind: output, shape index: {}]
  %s6 = sld [smem:[#allocation0]]
  $region30: #{feature_decoder_forward.1} parent=0
    _
  %s8 = ssub.s32 1, %s6
  %s9 = scalar_select 0, %s8, %s6
  // Predicated region
  $region2: #{feature_decoder_forward.1} parent=0 // pred_check
    _
  $region3: #{feature_decoder_forward.1} parent=0 // pred_check_branch
    %11 = sbr.rel (0) target = $region5
  $region4: #{feature_decoder_forward.1} parent=0 // pred_region
    _
  $region5: #{feature_decoder_forward.1} parent=0 // pred_fallthru
    _
  // Predicated region
  $region6: #{feature_decoder_forward.1} parent=0 // pred_check
    _
  $region7: #{feature_decoder_forward.1} parent=0 // pred_check_branch
    %13 = sbr.rel (0) target = $region9
  $region8: #{feature_decoder_forward.1} parent=0 // pred_region
    _
  $region9: #{feature_decoder_forward.1} parent=0 // pred_fallthru
    _
  // Predicated region
  $region10: #{feature_decoder_forward.1} parent=0 // pred_check
    _
  $region11: #{feature_decoder_forward.1} parent=0 // pred_check_branch
    %15 = sbr.rel (0) target = $region13
  $region12: #{feature_decoder_forward.1} parent=0 // pred_region
    _
  $region13: #{feature_decoder_forward.1} parent=0 // pred_fallthru
    _
  // Predicated region
  $region14: #{feature_decoder_forward.1} parent=0 // pred_check
    _
  $region15: #{feature_decoder_forward.1} parent=0 // pred_check_branch
    %17 = sbr.rel (0) target = $region17
  $region16: #{feature_decoder_forward.1} parent=0 // pred_region
    _
  $region17: #{feature_decoder_forward.1} parent=0 // pred_fallthru
    _
  // Predicated region
  $region18: #{feature_decoder_forward.1} parent=0 // pred_check
    _
  $region19: #{feature_decoder_forward.1} parent=0 // pred_check_branch
    %19 = sbr.rel (0) target = $region21
  $region20: #{feature_decoder_forward.1} parent=0 // pred_region
    _
  $region21: #{feature_decoder_forward.1} parent=0 // pred_fallthru
    _
  %v21 = vld [vmem:[%s1] sm:$0xf]
  %v22 = vld [vmem:[%s1 + $0x4] sm:$0xf]
  %v23 = vld [vmem:[%s0] sm:$0xf]
  %v24 = vld [vmem:[%s0 + $0x4] sm:$0xf]
  %v25 = vld [vmem:[%s0 + $0x8] sm:$0xf]
  %v26 = vld [vmem:[%s0 + $0xc] sm:$0xf]
  %v27 = vld [vmem:[%s2] sm:$0xff]
  %v28 = vld [vmem:[%s2 + $0x8] sm:$0xff]
  %30 = vset.pattern.permute.xlu0 0
  %31 = vperm.xlu0 %30, %v27
  %v32 = vpop.permute.xlu0 %31
  %35 = vset.pattern.permute.xlu0 0
  %36 = vperm.xlu0 %35, %v28
  %v37 = vpop.permute.xlu0 %36
  %v41 = vunpack.c.l.b16 %v21
  %v42 = vunpack.c.l.b16 %v22
  %v43 = vpack.c.b16 %v42, %v41
  %v48 = vunpack.c.l.b16 %v23
  %v49 = vunpack.c.l.b16 %v24
  %v50 = vunpack.c.l.b16 %v25
  %v51 = vunpack.c.l.b16 %v26
  %v52 = vpack.c.b16 %v49, %v48
  %v53 = vpack.c.b16 %v51, %v50
  %vm56 = vcmask 261120
  %v58 = vsel %vm56, %v43, 0
  %60 = vmatpush.bf16.msra.mxu0 0
  %61 = vmatpush.bf16.msra.mxu0 0
  %62 = vmatpush.bf16.msra.mxu0 0
  %63 = vmatpush.bf16.msra.mxu0 0
  %64 = vmatpush.bf16.msra.mxu0 0
  %65 = vmatpush.bf16.msra.mxu0 0
  %66 = vmatpush.bf16.msra.mxu0 %v53
  %67 = vmatpush.bf16.msra.mxu0 %v52
  %68 = vmatmul.bf16.gmra.mxu0 %v58
  %v69 = vpop.f32.mrf.mxu0
  %v70 = vadd.f32 %v32, %v69
  %v71 = vpop.f32.mrf.mxu0
  %v72 = vadd.f32 %v37, %v71
  %73 = vdwg.mxu0
  %vm74 = vcmp.ge.f32.partialorder %v70, 0.0
  %vm75 = vcmp.ge.f32.partialorder %v72, 0.0
  %v76 = vmul.f32 %v70, 0.1
  %v77 = vmul.f32 %v72, 0.1
  %v78 = vsel %vm74, %v70, %v76
  %v79 = vsel %vm75, %v72, %v77
  %v80 = vld [vmem:[%s3] sm:$0x7]
  %v81 = vpack.c.bf16 %v79, %v78
  %v82 = vld [vmem:[%s4] sm:$0x3f]
  %84 = vset.pattern.permute.xlu0 0
  %85 = vperm.xlu0 %84, %v82
  %v86 = vpop.permute.xlu0 %85
  %vm88 = vcmask 130048
  %v90 = vsel %vm88, %v80, 0
  %92 = vmatpush.bf16.msra.mxu0 0
  %93 = vmatpush.bf16.msra.mxu0 0
  %94 = vmatpush.bf16.msra.mxu0 0
  %95 = vmatpush.bf16.msra.mxu0 0
  %96 = vmatpush.bf16.msra.mxu0 0
  %97 = vmatpush.bf16.msra.mxu0 0
  %98 = vmatpush.bf16.msra.mxu0 0
  %99 = vmatpush.bf16.msra.mxu0 %v81
  %100 = vmatmul.bf16.gmra.mxu0 %v90
  %v101 = vpop.f32.mrf.mxu0
  %v102 = vadd.f32 %v86, %v101
  %v103 = vpop.f32.mrf.mxu0
  %104 = vdwg.mxu0
  %105 = vst [vmem:[%s5] sm:$0x3f] %v102
  // Predicated region
  $region22: #{feature_decoder_forward.1} parent=0 // pred_check
    _
  $region23: #{feature_decoder_forward.1} parent=0 // pred_check_branch
    %107 = sbr.rel (0) target = $region25
  $region24: #{feature_decoder_forward.1} parent=0 // pred_region
    _
  $region25: #{feature_decoder_forward.1} parent=0 // pred_fallthru
    _
  // Predicated region
  $region26: #{feature_decoder_forward.1} parent=0 // pred_check
    _
  $region27: #{feature_decoder_forward.1} parent=0 // pred_check_branch
    %109 = sbr.rel (0) target = $region29
  $region28: #{feature_decoder_forward.1} parent=0 // pred_region
    _
  $region29: #{feature_decoder_forward.1} parent=0 // pred_fallthru
    _

</llo_original>
